<compile_context>
chip_gen: v7x
topology: tpu7x:2x2x1
jax: 0.10.0
libtpu: 0.0.40
codegen_flags: <defaults>
</compile_context>

<pallas_src>
import functools

import numpy as np
import jax
import jax.numpy as jnp
from jax import lax
from jax.experimental import pallas as pl
from jax.experimental.pallas import tpu as pltpu

BN_EPS = 1e-5


# --------------------------- small in-kernel helper ---------------------------

def _window_as_matrix(win, m, cin):
    """(H, W, Cin) window -> (H*W, Cin) bf16 matmul operand.

    Go through f32 so the sublane-collapsing reshape stays on the native (8,128)
    f32 tiling (requires W % 8 == 0), then back to bf16 for the MXU."""
    return win.astype(jnp.float32).reshape(m, cin).astype(jnp.bfloat16)


# --------------------------- 1x1 conv (+BN+ReLU) as tiled matmul ---------------------------

def _mm_bn_act_kernel(x_ref, w_ref, s_ref, b_ref, o_ref, *, relu):
    y = jnp.dot(x_ref[0], w_ref[...], preferred_element_type=jnp.float32)
    y = y * s_ref[0] + b_ref[0]
    if relu:
        y = jnp.maximum(y, 0.0)
    o_ref[0] = y.astype(o_ref.dtype)


def conv1x1_bn_act(x_nmc, w, scale, bias_nb, *, relu=True,
                   out_dtype=jnp.bfloat16, tm_max=512):
    """x: (N, M, Cin), w: (Cin, Cout), scale: (Cout,), bias_nb: (N, Cout) -> (N, M, Cout)."""
    N, M, Cin = x_nmc.shape
    Cout = w.shape[-1]
    Mp = -(-M // 8) * 8
    tm = min(tm_max, Mp)
    Mp = -(-Mp // tm) * tm
    x = x_nmc.astype(jnp.bfloat16)
    if Mp != M:
        x = jnp.pad(x, ((0, 0), (0, Mp - M), (0, 0)))
    out = pl.pallas_call(
        functools.partial(_mm_bn_act_kernel, relu=relu),
        out_shape=jax.ShapeDtypeStruct((N, Mp, Cout), out_dtype),
        grid_spec=pltpu.PrefetchScalarGridSpec(
            num_scalar_prefetch=0,
            grid=(N, Mp // tm),
            in_specs=[
                pl.BlockSpec((1, tm, Cin), lambda n, m: (n, m, 0)),
                pl.BlockSpec((Cin, Cout), lambda n, m: (0, 0)),
                pl.BlockSpec((1, 1, Cout), lambda n, m: (0, 0, 0)),
                pl.BlockSpec((1, 1, Cout), lambda n, m: (n, 0, 0)),
            ],
            out_specs=pl.BlockSpec((1, tm, Cout), lambda n, m: (n, m, 0)),
        ),
        compiler_params=pltpu.CompilerParams(
            dimension_semantics=("parallel", "parallel")),
    )(x, w.astype(jnp.bfloat16),
      scale.reshape(1, 1, Cout).astype(jnp.float32),
      bias_nb.reshape(N, 1, Cout).astype(jnp.float32))
    return out[:, :M, :] if Mp != M else out


# --------------------------- fused ASPP conv branches ---------------------------

def _aspp_branches_kernel(x_ref, w_ref, s_ref, b_ref, o_ref, acc_ref,
                          *, H, W, pad, dilations):
    """Grid = (N, branch). Branch 0: 1x1 conv; branches 1..: dilated 3x3 conv.
    Output is written into the branch's 256-wide channel slice of the concat buffer."""
    cin = x_ref.shape[-1]
    m = H * W
    bidx = pl.program_id(1)
    acc_ref[...] = jnp.zeros_like(acc_ref)

    @pl.when(bidx == 0)
    def _():
        win = x_ref[0, pad:pad + H, pad:pad + W, :]
        acc_ref[...] += jnp.dot(_window_as_matrix(win, m, cin), w_ref[0, 4],
                                preferred_element_type=jnp.float32)

    for bi, d in enumerate(dilations):
        @pl.when(bidx == bi + 1)
        def _(d=d):
            for t in range(9):
                ky, kx = t // 3, t % 3
                r0 = pad + (ky - 1) * d
                c0 = pad + (kx - 1) * d
                win = x_ref[0, r0:r0 + H, c0:c0 + W, :]
                acc_ref[...] += jnp.dot(_window_as_matrix(win, m, cin), w_ref[0, t],
                                        preferred_element_type=jnp.float32)

    y = jnp.maximum(acc_ref[...] * s_ref[0] + b_ref[0], 0.0)
    o_ref[0] = y.astype(o_ref.dtype)


def aspp_conv_branches(lf_pad_bf16, w_all, s_all, b_all, dilations, H, W, pad):
    """lf_pad: (N, H+2p, W+2p, Cin) bf16 -> (N, H*W, n_branches*256) bf16 (concat buffer)."""
    N, Hp, Wp, Cin = lf_pad_bf16.shape
    nb, _, _, Cout = w_all.shape
    M = H * W
    assert H % 8 == 0 and W % 8 == 0  # TODO(synk): pad W to a multiple of 8 for general shapes.
    kernel = functools.partial(_aspp_branches_kernel, H=H, W=W, pad=pad,
                               dilations=tuple(dilations))
    return pl.pallas_call(
        kernel,
        out_shape=jax.ShapeDtypeStruct((N, M, nb * Cout), jnp.bfloat16),
        grid_spec=pltpu.PrefetchScalarGridSpec(
            num_scalar_prefetch=0,
            grid=(N, nb),
            in_specs=[
                pl.BlockSpec((1, Hp, Wp, Cin), lambda n, b: (n, 0, 0, 0)),
                pl.BlockSpec((1, 9, Cin, Cout), lambda n, b: (b, 0, 0, 0)),
                pl.BlockSpec((1, 1, Cout), lambda n, b: (b, 0, 0)),
                pl.BlockSpec((1, 1, Cout), lambda n, b: (b, 0, 0)),
            ],
            out_specs=pl.BlockSpec((1, M, Cout), lambda n, b: (n, 0, b)),
            scratch_shapes=[pltpu.VMEM((M, Cout), jnp.float32)],
        ),
        compiler_params=pltpu.CompilerParams(
            dimension_semantics=("parallel", "arbitrary")),
    )(lf_pad_bf16, w_all, s_all, b_all)


# --------------------------- ASPP pooling branch folded into projection bias ---------------------------

def _pool_projbias_kernel(x_ref, wp_ref, sp_ref, bp_ref, wb_ref, sq_ref, bq_ref, o_ref):
    x = x_ref[...].astype(jnp.float32)                       # (N, M, Cs)
    pooled = jnp.mean(x, axis=1)                             # (N, Cs)
    h = jnp.dot(pooled, wp_ref[...], preferred_element_type=jnp.float32)
    h = jnp.maximum(h * sp_ref[...] + bp_ref[...], 0.0)      # pooled-branch conv+BN+ReLU
    y = jnp.dot(h, wb_ref[...], preferred_element_type=jnp.float32)
    o_ref[...] = y * sq_ref[...] + bq_ref[...]               # per-batch projection bias


def pool_projbias(x_nmc_bf16, w_pool, s_pool, b_pool, w_b, s_proj, b_proj):
    N, M, Cs = x_nmc_bf16.shape
    C = w_pool.shape[-1]
    return pl.pallas_call(
        _pool_projbias_kernel,
        out_shape=jax.ShapeDtypeStruct((N, C), jnp.float32),
        grid_spec=pltpu.PrefetchScalarGridSpec(
            num_scalar_prefetch=0,
            grid=(1,),
            in_specs=[
                pl.BlockSpec((N, M, Cs), lambda i: (0, 0, 0)),
                pl.BlockSpec((Cs, C), lambda i: (0, 0)),
                pl.BlockSpec((1, C), lambda i: (0, 0)),
                pl.BlockSpec((1, C), lambda i: (0, 0)),
                pl.BlockSpec((C, C), lambda i: (0, 0)),
                pl.BlockSpec((1, C), lambda i: (0, 0)),
                pl.BlockSpec((1, C), lambda i: (0, 0)),
            ],
            out_specs=pl.BlockSpec((N, C), lambda i: (0, 0)),
        ),
    )(x_nmc_bf16,
      w_pool.astype(jnp.float32),
      s_pool.reshape(1, C).astype(jnp.float32), b_pool.reshape(1, C).astype(jnp.float32),
      w_b.astype(jnp.float32),
      s_proj.reshape(1, C).astype(jnp.float32), b_proj.reshape(1, C).astype(jnp.float32))


# --------------------------- separable bilinear upsample ---------------------------

def _left_matmul_kernel(w_ref, x_ref, o_ref):
    o_ref[0] = jnp.dot(w_ref[...], x_ref[0].astype(jnp.float32),
                       preferred_element_type=jnp.float32)


def left_matmul(w_pq, x_nql):
    N, Q, L = x_nql.shape
    P = w_pq.shape[0]
    return pl.pallas_call(
        _left_matmul_kernel,
        out_shape=jax.ShapeDtypeStruct((N, P, L), jnp.float32),
        grid_spec=pltpu.PrefetchScalarGridSpec(
            num_scalar_prefetch=0,
            grid=(N,),
            in_specs=[
                pl.BlockSpec((P, Q), lambda n: (0, 0)),
                pl.BlockSpec((1, Q, L), lambda n: (n, 0, 0)),
            ],
            out_specs=pl.BlockSpec((1, P, L), lambda n: (n, 0, 0)),
        ),
        compiler_params=pltpu.CompilerParams(dimension_semantics=("parallel",)),
    )(w_pq.astype(jnp.float32), x_nql)


def bilinear_matrix(in_size, out_size):
    """PyTorch F.interpolate(mode='bilinear', align_corners=False) 1-D weights."""
    W = np.zeros((out_size, in_size), dtype=np.float32)
    scale = in_size / out_size
    for d in range(out_size):
        src = (d + 0.5) * scale - 0.5
        src = max(src, 0.0)
        x0 = min(int(np.floor(src)), in_size - 1)
        x1 = min(x0 + 1, in_size - 1)
        lam = src - x0
        W[d, x0] += 1.0 - lam
        W[d, x1] += lam
    return W


def bilinear_upsample(x_nhwc, h_out, w_out):
    """Separable bilinear resize (align_corners=False), f32 output."""
    N, Hs, Ws, C = x_nhwc.shape
    Wh = jnp.asarray(bilinear_matrix(Hs, h_out))     # (h_out, Hs)
    Ww = jnp.asarray(bilinear_matrix(Ws, w_out))     # (w_out, Ws)
    y = left_matmul(Wh, x_nhwc.reshape(N, Hs, Ws * C))           # (N, h_out, Ws*C)
    y = y.reshape(N, h_out, Ws, C).transpose(0, 2, 1, 3)         # (N, Ws, h_out, C)
    y = left_matmul(Ww, y.reshape(N, Ws, h_out * C))             # (N, w_out, h_out*C)
    return y.reshape(N, w_out, h_out, C).transpose(0, 2, 1, 3)   # (N, h_out, w_out, C)


# --------------------------- fused classifier (3x3+BN+ReLU+1x1+bias) ---------------------------

def _classifier_kernel(x_ref, w1_ref, s1_ref, b1_ref, w2_ref, b2_ref, o_ref, acc_ref,
                       *, H, W):
    cin = x_ref.shape[-1]
    m = H * W
    acc_ref[...] = jnp.zeros_like(acc_ref)
    for t in range(9):
        ky, kx = t // 3, t % 3
        win = x_ref[0, ky:ky + H, kx:kx + W, :]
        acc_ref[...] += jnp.dot(_window_as_matrix(win, m, cin), w1_ref[t],
                                preferred_element_type=jnp.float32)
    y = jnp.maximum(acc_ref[...] * s1_ref[...] + b1_ref[...], 0.0)
    o_ref[0] = jnp.dot(y, w2_ref[...], preferred_element_type=jnp.float32) + b2_ref[...]


def classifier_head(cat_pad_bf16, w1_taps, s1, b1, w2, b2, H, W):
    N, Hp, Wp, Cin = cat_pad_bf16.shape
    C1 = w1_taps.shape[-1]
    K = w2.shape[-1]
    M = H * W
    assert H % 8 == 0 and W % 8 == 0  # TODO(synk): pad W to a multiple of 8 for general shapes.
    return pl.pallas_call(
        functools.partial(_classifier_kernel, H=H, W=W),
        out_shape=jax.ShapeDtypeStruct((N, M, K), jnp.float32),
        grid_spec=pltpu.PrefetchScalarGridSpec(
            num_scalar_prefetch=0,
            grid=(N,),
            in_specs=[
                pl.BlockSpec((1, Hp, Wp, Cin), lambda n: (n, 0, 0, 0)),
                pl.BlockSpec((9, Cin, C1), lambda n: (0, 0, 0)),
                pl.BlockSpec((1, C1), lambda n: (0, 0)),
                pl.BlockSpec((1, C1), lambda n: (0, 0)),
                pl.BlockSpec((C1, K), lambda n: (0, 0)),
                pl.BlockSpec((1, K), lambda n: (0, 0)),
            ],
            out_specs=pl.BlockSpec((1, M, K), lambda n: (n, 0, 0)),
            scratch_shapes=[pltpu.VMEM((M, C1), jnp.float32)],
        ),
        compiler_params=pltpu.CompilerParams(dimension_semantics=("parallel",)),
    )(cat_pad_bf16, w1_taps.astype(jnp.bfloat16),
      s1.reshape(1, C1).astype(jnp.float32), b1.reshape(1, C1).astype(jnp.float32),
      w2.astype(jnp.float32), b2.reshape(1, K).astype(jnp.float32))


# --------------------------- Parameter init (PyTorch-equivalent) ---------------------------

def kaiming_hwio(key, kh, kw, cin, cout):
    fan_in = cin * kh * kw
    std = (2.0 / fan_in) ** 0.5
    return jax.random.normal(key, (kh, kw, cin, cout), jnp.float32) * std


def bn_fold(c):
    gamma = jnp.ones((c,), jnp.float32)
    beta = jnp.zeros((c,), jnp.float32)
    mean = jnp.zeros((c,), jnp.float32)
    var = jnp.ones((c,), jnp.float32)
    scale = gamma / jnp.sqrt(var + BN_EPS)
    bias = beta - mean * scale
    return scale, bias


def init_params(key, in_channels, low_level_channels, num_classes,
                aspp_dilate=(12, 24, 36)):
    ks = jax.random.split(key, 16)
    p = {}
    p['proj_w'] = kaiming_hwio(ks[0], 1, 1, low_level_channels, 48)
    p['proj_s'], p['proj_b'] = bn_fold(48)
    p['aspp0_w'] = kaiming_hwio(ks[1], 1, 1, in_channels, 256)
    p['aspp0_s'], p['aspp0_b'] = bn_fold(256)
    for i, _ in enumerate(aspp_dilate):
        p[f'aspp{i+1}_w'] = kaiming_hwio(ks[2 + i], 3, 3, in_channels, 256)
        p[f'aspp{i+1}_s'], p[f'aspp{i+1}_b'] = bn_fold(256)
    p['aspp_pool_w'] = kaiming_hwio(ks[5], 1, 1, in_channels, 256)
    p['aspp_pool_s'], p['aspp_pool_b'] = bn_fold(256)
    n_branches = 2 + len(aspp_dilate)
    p['aspp_proj_w'] = kaiming_hwio(ks[6], 1, 1, n_branches * 256, 256)
    p['aspp_proj_s'], p['aspp_proj_b'] = bn_fold(256)
    p['cls0_w'] = kaiming_hwio(ks[7], 3, 3, 304, 256)
    p['cls0_s'], p['cls0_b'] = bn_fold(256)
    p['cls3_w'] = kaiming_hwio(ks[8], 1, 1, 256, num_classes)
    bound = 1.0 / (256 ** 0.5)  # nn.Conv2d default bias init range
    p['cls3_bias'] = jax.random.uniform(ks[9], (num_classes,), jnp.float32, -bound, bound)
    return p


# --------------------------- Forward pass ---------------------------

def deeplab_head_v3plus(params, low_level_feature, middle_feature1, middle_feature2,
                        last_feature, aspp_dilate=(12, 24, 36)):
    del middle_feature1, middle_feature2  # unused in the PyTorch forward as well
    ll = jnp.transpose(low_level_feature, (0, 2, 3, 1))
    lf = jnp.transpose(last_feature, (0, 2, 3, 1))
    N, Hl, Wl, Cll = ll.shape
    _, Hs, Ws, Cs = lf.shape
    Cout = 256
    nconv = 1 + len(aspp_dilate)

    ll_bf = ll.astype(jnp.bfloat16)
    lf_bf = lf.astype(jnp.bfloat16)

    # self.project: 1x1 conv + BN + ReLU on low-level features -> 48 channels
    bias48 = jnp.broadcast_to(params['proj_b'][None, :], (N, 48))
    ll_proj = conv1x1_bn_act(ll_bf.reshape(N, Hl * Wl, Cll),
                             params['proj_w'].reshape(Cll, 48),
                             params['proj_s'], bias48, relu=True)
    ll_proj = ll_proj.reshape(N, Hl, Wl, 48)

    # Fused ASPP conv branches (1x1 + three dilated 3x3) -> channel-sliced concat buffer
    pad = max(aspp_dilate)
    lf_pad = jnp.pad(lf_bf, ((0, 0), (pad, pad), (pad, pad), (0, 0)))
    w0 = jnp.zeros((9, Cs, Cout), jnp.float32).at[4].set(params['aspp0_w'].reshape(Cs, Cout))
    w_list = [w0] + [params[f'aspp{i+1}_w'].reshape(9, Cs, Cout)
                     for i in range(len(aspp_dilate))]
    w_all = jnp.stack(w_list).astype(jnp.bfloat16)                       # (4, 9, Cs, 256)
    s_all = jnp.stack([params['aspp0_s']] + [params[f'aspp{i+1}_s']
                      for i in range(len(aspp_dilate))]).reshape(nconv, 1, Cout)
    b_all = jnp.stack([params['aspp0_b']] + [params[f'aspp{i+1}_b']
                      for i in range(len(aspp_dilate))]).reshape(nconv, 1, Cout)
    cat4 = aspp_conv_branches(lf_pad, w_all, s_all, b_all, aspp_dilate, Hs, Ws, pad)

    # ASPP pooling branch folded into a per-batch projection bias (no broadcast / 5th concat)
    proj_w_full = params['aspp_proj_w'].reshape((nconv + 1) * Cout, Cout)  # (1280, 256)
    W_a = proj_w_full[:nconv * Cout]                                       # conv-branch part
    W_b = proj_w_full[nconv * Cout:]                                       # pooled-branch part
    proj_bias = pool_projbias(lf_bf.reshape(N, Hs * Ws, Cs),
                              params['aspp_pool_w'].reshape(Cs, Cout),
                              params['aspp_pool_s'], params['aspp_pool_b'],
                              W_b, params['aspp_proj_s'], params['aspp_proj_b'])  # (N, 256)

    # ASPP projection (1x1 + BN + ReLU).  TODO(synk): Dropout(0.5) modeled as eval-mode identity.
    asp = conv1x1_bn_act(cat4, W_a, params['aspp_proj_s'], proj_bias, relu=True)
    asp = asp.reshape(N, Hs, Ws, Cout)

    # Bilinear upsample to low-level resolution (align_corners=False), separable form.
    up = bilinear_upsample(asp, Hl, Wl)                                    # (N, Hl, Wl, 256) f32

    # Classifier: concat(48 + 256) -> fused 3x3+BN+ReLU+1x1(+bias)
    cat = jnp.concatenate([ll_proj, up.astype(jnp.bfloat16)], axis=-1)     # (N, Hl, Wl, 304)
    cat_pad = jnp.pad(cat, ((0, 0), (1, 1), (1, 1), (0, 0)))
    num_classes = params['cls3_w'].shape[-1]
    logits = classifier_head(cat_pad, params['cls0_w'].reshape(9, 304, 256),
                             params['cls0_s'], params['cls0_b'],
                             params['cls3_w'].reshape(256, num_classes),
                             params['cls3_bias'], Hl, Wl)
    logits = logits.reshape(N, Hl, Wl, num_classes)
    return jnp.transpose(logits, (0, 3, 1, 2))                             # NCHW


# --------------------------- Pure-JAX reference (mirrors kernel dtypes) ---------------------------

def _ref_conv(x, w, dilation, padding):
    return lax.conv_general_dilated(
        x, w, window_strides=(1, 1),
        padding=((padding, padding), (padding, padding)),
        rhs_dilation=(dilation, dilation),
        dimension_numbers=('NHWC', 'HWIO', 'NHWC'),
        preferred_element_type=jnp.float32)


def reference_forward(params, low_level_feature, m1, m2, last_feature,
                      aspp_dilate=(12, 24, 36)):
    bf = lambda a: a.astype(jnp.bfloat16)
    ll = bf(jnp.transpose(low_level_feature, (0, 2, 3, 1)))
    lf = bf(jnp.transpose(last_feature, (0, 2, 3, 1)))
    N, Hl, Wl, _ = ll.shape
    _, Hs, Ws, Cs = lf.shape
    Cout = 256
    nconv = 1 + len(aspp_dilate)

    y = _ref_conv(ll, bf(params['proj_w']), 1, 0)
    ll_proj = bf(jnp.maximum(y * params['proj_s'] + params['proj_b'], 0.0))

    branches = []
    y = _ref_conv(lf, bf(params['aspp0_w']), 1, 0)
    branches.append(bf(jnp.maximum(y * params['aspp0_s'] + params['aspp0_b'], 0.0)))
    for i, d in enumerate(aspp_dilate):
        y = _ref_conv(lf, bf(params[f'aspp{i+1}_w']), d, d)
        branches.append(bf(jnp.maximum(y * params[f'aspp{i+1}_s'] + params[f'aspp{i+1}_b'], 0.0)))
    cat4 = jnp.concatenate(branches, axis=-1)                              # (N, Hs, Ws, 1024)

    pooled = jnp.mean(lf.astype(jnp.float32), axis=(1, 2))                 # (N, Cs)
    h = jnp.maximum(pooled @ params['aspp_pool_w'].reshape(Cs, Cout)
                    * params['aspp_pool_s'] + params['aspp_pool_b'], 0.0)
    proj_w_full = params['aspp_proj_w'].reshape((nconv + 1) * Cout, Cout)
    W_a, W_b = proj_w_full[:nconv * Cout], proj_w_full[nconv * Cout:]
    bias_n = (h @ W_b) * params['aspp_proj_s'] + params['aspp_proj_b']     # (N, 256)
    y = jnp.einsum('nhwc,ck->nhwk', cat4, bf(W_a), preferred_element_type=jnp.float32)
    asp = bf(jnp.maximum(y * params['aspp_proj_s'] + bias_n[:, None, None, :], 0.0))

    Wh = jnp.asarray(bilinear_matrix(Hs, Hl))
    Ww_ = jnp.asarray(bilinear_matrix(Ws, Wl))
    a32 = asp.astype(jnp.float32)
    up = jnp.einsum('ph,nhwc->npwc', Wh, a32)
    up = jnp.einsum('qw,npwc->npqc', Ww_, up)

    cat = jnp.concatenate([ll_proj, bf(up)], axis=-1)
    y = _ref_conv(cat, bf(params['cls0_w']), 1, 1)
    y = jnp.maximum(y * params['cls0_s'] + params['cls0_b'], 0.0)
    num_classes = params['cls3_w'].shape[-1]
    logits = jnp.einsum('nhwc,ck->nhwk', y, params['cls3_w'].reshape(Cout, num_classes))
    logits = logits + params['cls3_bias']
    return jnp.transpose(logits, (0, 3, 1, 2))


# --------------------------- Main ---------------------------

if __name__ == "__main__":
    key = jax.random.PRNGKey(0)
    kp, k1, k2, k3, k4 = jax.random.split(key, 5)

    in_channels, low_level_channels, num_classes = 32, 24, 8
    N = 2
    low_level_feature = jax.random.normal(k1, (N, low_level_channels, 16, 16), jnp.float32)
    middle_feature1 = jax.random.normal(k2, (N, 16, 16, 16), jnp.float32)   # unused by forward
    middle_feature2 = jax.random.normal(k3, (N, 16, 8, 8), jnp.float32)     # unused by forward
    last_feature = jax.random.normal(k4, (N, in_channels, 8, 8), jnp.float32)

    params = init_params(kp, in_channels, low_level_channels, num_classes)

    out = deeplab_head_v3plus(params, low_level_feature, middle_feature1,
                              middle_feature2, last_feature)
    out = jax.block_until_ready(out)
    assert out.shape == (N, num_classes, 16, 16), out.shape

    ref = jax.block_until_ready(
        reference_forward(params, low_level_feature, middle_feature1,
                          middle_feature2, last_feature))
    np.testing.assert_allclose(np.asarray(out), np.asarray(ref), rtol=2e-2, atol=2e-2)

    print("KERNEL_OK")
</pallas_src>

<mosaic_0001>
module attributes {stable_mosaic.version = 11 : i64} {
  func.func @_mm_bn_act_kernel(%arg0: i32, %arg1: i32, %arg2: memref<1x256x24xbf16, #tpu.memory_space<vmem>>, %arg3: memref<24x48xbf16, #tpu.memory_space<vmem>>, %arg4: memref<1x1x48xf32, #tpu.memory_space<vmem>>, %arg5: memref<1x1x48xf32, #tpu.memory_space<vmem>>, %arg6: memref<1x256x48xbf16, #tpu.memory_space<vmem>>) attributes {dimension_semantics = [#tpu.dimension_semantics<parallel>, #tpu.dimension_semantics<parallel>], iteration_bounds = array<i64: 2, 1>, scalar_prefetch = 0 : i64, scratch_operands = 0 : i64, tpu.core_type = #tpu.core_type<tc>, window_params = [{transform_indices = @transform_0, window_bounds = array<i64: 1, 256, 24>}, {pipeline_mode = #tpu.pipeline_mode<synchronous>, transform_indices = @transform_1, window_bounds = array<i64: 24, 48>}, {pipeline_mode = #tpu.pipeline_mode<synchronous>, transform_indices = @transform_2, window_bounds = array<i64: 1, 1, 48>}, {transform_indices = @transform_3, window_bounds = array<i64: 1, 1, 48>}, {transform_indices = @transform_4, window_bounds = array<i64: 1, 256, 48>}]} {
    %c0 = arith.constant 0 : index
    %c0_0 = arith.constant 0 : index
    %c0_1 = arith.constant 0 : index
    %0 = vector.load %arg2[%c0, %c0_0, %c0_1] : memref<1x256x24xbf16, #tpu.memory_space<vmem>>, vector<1x256x24xbf16>
    %1 = vector.shape_cast %0 : vector<1x256x24xbf16> to vector<256x24xbf16>
    %c0_2 = arith.constant 0 : index
    %c0_3 = arith.constant 0 : index
    %2 = vector.load %arg3[%c0_2, %c0_3] : memref<24x48xbf16, #tpu.memory_space<vmem>>, vector<24x48xbf16>
    %cst = arith.constant dense<0.000000e+00> : vector<256x48xf32>
    %3 = tpu.matmul %1, %2, %cst {dimension_numbers = #tpu.dot_dimension_numbers<[1], [0], [0], [1], [0, 0, 1, 1], [], []>} : vector<256x24xbf16>, vector<24x48xbf16>, vector<256x48xf32> -> vector<256x48xf32>
    %c0_4 = arith.constant 0 : index
    %c0_5 = arith.constant 0 : index
    %c0_6 = arith.constant 0 : index
    %4 = vector.load %arg4[%c0_4, %c0_5, %c0_6] : memref<1x1x48xf32, #tpu.memory_space<vmem>>, vector<1x1x48xf32>
    %5 = vector.shape_cast %4 : vector<1x1x48xf32> to vector<1x48xf32>
    %6 = vector.broadcast %5 : vector<1x48xf32> to vector<256x48xf32>
    %7 = arith.mulf %3, %6 : vector<256x48xf32>
    %c0_7 = arith.constant 0 : index
    %c0_8 = arith.constant 0 : index
    %c0_9 = arith.constant 0 : index
    %8 = vector.load %arg5[%c0_7, %c0_8, %c0_9] : memref<1x1x48xf32, #tpu.memory_space<vmem>>, vector<1x1x48xf32>
    %9 = vector.shape_cast %8 : vector<1x1x48xf32> to vector<1x48xf32>
    %10 = vector.broadcast %9 : vector<1x48xf32> to vector<256x48xf32>
    %11 = arith.addf %7, %10 : vector<256x48xf32>
    %cst_10 = arith.constant 0.000000e+00 : f32
    %12 = vector.broadcast %cst_10 : f32 to vector<256x48xf32>
    %13 = arith.maximumf %11, %12 : vector<256x48xf32>
    %14 = arith.truncf %13 : vector<256x48xf32> to vector<256x48xbf16>
    %c0_11 = arith.constant 0 : index
    %c0_12 = arith.constant 0 : index
    %c0_13 = arith.constant 0 : index
    %15 = vector.load %arg6[%c0_11, %c0_12, %c0_13] : memref<1x256x48xbf16, #tpu.memory_space<vmem>>, vector<1x256x48xbf16>
    %16 = vector.shape_cast %15 : vector<1x256x48xbf16> to vector<256x48xbf16>
    %17 = vector.shape_cast %14 : vector<256x48xbf16> to vector<1x256x48xbf16>
    tpu.vector_store %arg6[%c0_11, %c0_12, %c0_13], %17 {strides = array<i32>} : memref<1x256x48xbf16, #tpu.memory_space<vmem>>, vector<1x256x48xbf16>,
    return
  }
  func.func @transform_0(%arg0: i32, %arg1: i32) -> (i32, i32, i32) {
    %c0_i32 = arith.constant 0 : i32
    %c0_i32_0 = arith.constant 0 : i32
    return %arg0, %arg1, %c0_i32 : i32, i32, i32
  }
  func.func @transform_1(%arg0: i32, %arg1: i32) -> (i32, i32) {
    %c0_i32 = arith.constant 0 : i32
    %c0_i32_0 = arith.constant 0 : i32
    %c0_i32_1 = arith.constant 0 : i32
    return %c0_i32, %c0_i32_0 : i32, i32
  }
  func.func @transform_2(%arg0: i32, %arg1: i32) -> (i32, i32, i32) {
    %c0_i32 = arith.constant 0 : i32
    %c0_i32_0 = arith.constant 0 : i32
    %c0_i32_1 = arith.constant 0 : i32
    %c0_i32_2 = arith.constant 0 : i32
    return %c0_i32, %c0_i32_0, %c0_i32_1 : i32, i32, i32
  }
  func.func @transform_3(%arg0: i32, %arg1: i32) -> (i32, i32, i32) {
    %c0_i32 = arith.constant 0 : i32
    %c0_i32_0 = arith.constant 0 : i32
    %c0_i32_1 = arith.constant 0 : i32
    return %arg0, %c0_i32, %c0_i32_0 : i32, i32, i32
  }
  func.func @transform_4(%arg0: i32, %arg1: i32) -> (i32, i32, i32) {
    %c0_i32 = arith.constant 0 : i32
    %c0_i32_0 = arith.constant 0 : i32
    return %arg0, %arg1, %c0_i32 : i32, i32, i32
  }
}

</mosaic_0001>

<llo_original>
// kernel: tpu_custom_call.1
$region0: #{tpu_custom_call.1}
  #allocation0 [shape = 'u32[]', space=smem, size = 0x4, offset = 0x4, fixed_abs, tag = 'smem constant byte address 0x4 - core index']
  #allocation1 [shape = 'u32[144,128]{1,0:T(1,128)}', space=vmem, size = 0x12000, scoped, tag = 'internal scratch']
  %s0 = inlined_call_operand.vmem [shape: bf16[2,256,24], index: 0, kind: input, shape index: {}]
  %s1 = inlined_call_operand.vmem [shape: bf16[24,48], index: 1, kind: input, shape index: {}]
  %s2 = inlined_call_operand.vmem [shape: f32[1,1,48], index: 2, kind: input, shape index: {}]
  %s3 = inlined_call_operand.vmem [shape: f32[2,1,48], index: 3, kind: input, shape index: {}]
  %s4 = inlined_call_operand.vmem [shape: bf16[2,256,48], index: 4, kind: output, shape index: {}]
  %s5 = sld [smem:[#allocation0]]
  $region49: #{tpu_custom_call.1} parent=0
    _
  %s7 = ssub.s32 1, %s5
  %s8 = scalar_select 0, %s7, %s5
  loop: start=0, step=1, limit=4
  $region2: #{tpu_custom_call.1} parent=0 // loop_pre_header
    _
  $region3: #{tpu_custom_call.1} parent=0 // loop_header
    %s10 = sphi 0, %s14
    %p11 = scmp.ge.s32.totalorder %s10, 4
    %s17 = sphi 0, %s29
    %s18 = sphi 0, %s25
    %s19 = sphi 0, %s17
    %s20 = sphi 0, %s18
    %s21 = sphi 0, %s19
    %s22 = sphi 0, %s20
    %s34 = sphi 0, %s36
    %s37 = sphi 0, %s34
    %s38 = sphi 0, %s37
    %s54 = sphi 0, %s38
    %s58 = sphi 0, %s58
    %s60 = sphi 0, %s58
    %s61 = sphi 0, %s60
    %s75 = sphi 0, %s61
    %s79 = sphi 0, %s79
    %s81 = sphi 0, %s79
    %s82 = sphi 0, %s81
    %s96 = sphi 0, %s82
    %s102 = sphi 0, %s104
    %s105 = sphi 0, %s102
    %s106 = sphi 0, %s105
    %s122 = sphi 0, %s106
    %s130 = sphi 0, %s132
    %s133 = sphi 0, %s130
    %s134 = sphi 0, %s133
    %s150 = sphi 0, %s134
  $region4: #{tpu_custom_call.1} parent=0 // loop_header_branch
    %13 = sbr.rel (%p11) target = $region8
  $region5: #{tpu_custom_call.1} parent=0 // loop_body
    %s15 = ssub.s32 %s10, 1
    %s16 = ssub.s32 %s10, 2
    %s23 = sadd.s32 1, %s18
    %p24 = scmp.ge.s32.totalorder %s23, 1
    %s25 = scalar_select %p24, 0, %s23
    %s26 = sadd.s32 1, %s17
    %s27 = scalar_select %p24, %s26, %s17
    %p28 = scmp.ge.s32.totalorder %s27, 2
    %s29 = scalar_select %p28, 0, %s27
    %s30 = ssub.s32 %s17, %s29
    %s31 = ssub.s32 %s18, %s25
    %s32 = sor.u32 %s30, %s31
    %p33 = scmp.eq.s32.totalorder %s32, 0
    %s35 = sadd.s32 %s34, 1
    %s36 = scalar_select %p33, %s34, %s35
    %p39 = pneg %p33
    %p40 = scmp.eq.s32.totalorder %s10, 1
    %p41 = por %p39, %p40
    %p42 = scmp.ne.s32.totalorder %s34, %s37
    %p43 = scmp.eq.s32.totalorder %s10, 0
    %p44 = por %p42, %p43
    %p45 = scmp.ne.s32.totalorder %s34, %s37
    %p46 = scmp.eq.s32.totalorder %s15, 1
    %p47 = por %p45, %p46
    %p48 = scmp.ne.s32.totalorder %s37, %s38
    %p49 = scmp.eq.s32.totalorder %s15, 0
    %p50 = por %p48, %p49
    %p51 = scmp.ne.s32.totalorder %s37, %s38
    %p52 = scmp.eq.s32.totalorder %s16, 1
    %p53 = por %p51, %p52
    %p55 = scmp.ne.s32.totalorder %s38, %s54
    %p56 = scmp.eq.s32.totalorder %s16, 0
    %p57 = por %p55, %p56
    %s59 = sadd.s32 %s58, 1
    %p62 = scmp.eq.s32.totalorder %s10, 1
    %p63 = scmp.ne.s32.totalorder %s58, %s60
    %p64 = scmp.eq.s32.totalorder %s10, 0
    %p65 = por %p63, %p64
    %p66 = scmp.ne.s32.totalorder %s58, %s60
    %p67 = scmp.eq.s32.totalorder %s15, 1
    %p68 = por %p66, %p67
    %p69 = scmp.ne.s32.totalorder %s60, %s61
    %p70 = scmp.eq.s32.totalorder %s15, 0
    %p71 = por %p69, %p70
    %p72 = scmp.ne.s32.totalorder %s60, %s61
    %p73 = scmp.eq.s32.totalorder %s16, 1
    %p74 = por %p72, %p73
    %p76 = scmp.ne.s32.totalorder %s61, %s75
    %p77 = scmp.eq.s32.totalorder %s16, 0
    %p78 = por %p76, %p77
    %s80 = sadd.s32 %s79, 1
    %p83 = scmp.eq.s32.totalorder %s10, 1
    %p84 = scmp.ne.s32.totalorder %s79, %s81
    %p85 = scmp.eq.s32.totalorder %s10, 0
    %p86 = por %p84, %p85
    %p87 = scmp.ne.s32.totalorder %s79, %s81
    %p88 = scmp.eq.s32.totalorder %s15, 1
    %p89 = por %p87, %p88
    %p90 = scmp.ne.s32.totalorder %s81, %s82
    %p91 = scmp.eq.s32.totalorder %s15, 0
    %p92 = por %p90, %p91
    %p93 = scmp.ne.s32.totalorder %s81, %s82
    %p94 = scmp.eq.s32.totalorder %s16, 1
    %p95 = por %p93, %p94
    %p97 = scmp.ne.s32.totalorder %s82, %s96
    %p98 = scmp.eq.s32.totalorder %s16, 0
    %p99 = por %p97, %p98
    %s100 = ssub.s32 %s17, %s29
    %p101 = scmp.eq.s32.totalorder %s100, 0
    %s103 = sadd.s32 %s102, 1
    %s104 = scalar_select %p101, %s102, %s103
    %p107 = pneg %p101
    %p108 = scmp.eq.s32.totalorder %s10, 1
    %p109 = por %p107, %p108
    %p110 = scmp.ne.s32.totalorder %s102, %s105
    %p111 = scmp.eq.s32.totalorder %s10, 0
    %p112 = por %p110, %p111
    %p113 = scmp.ne.s32.totalorder %s102, %s105
    %p114 = scmp.eq.s32.totalorder %s15, 1
    %p115 = por %p113, %p114
    %p116 = scmp.ne.s32.totalorder %s105, %s106
    %p117 = scmp.eq.s32.totalorder %s15, 0
    %p118 = por %p116, %p117
    %p119 = scmp.ne.s32.totalorder %s105, %s106
    %p120 = scmp.eq.s32.totalorder %s16, 1
    %p121 = por %p119, %p120
    %p123 = scmp.ne.s32.totalorder %s106, %s122
    %p124 = scmp.eq.s32.totalorder %s16, 0
    %p125 = por %p123, %p124
    %s126 = ssub.s32 %s17, %s29
    %s127 = ssub.s32 %s18, %s25
    %s128 = sor.u32 %s126, %s127
    %p129 = scmp.eq.s32.totalorder %s128, 0
    %s131 = sadd.s32 %s130, 1
    %s132 = scalar_select %p129, %s130, %s131
    %p135 = pneg %p129
    %p136 = scmp.eq.s32.totalorder %s10, 1
    %p137 = por %p135, %p136
    %p138 = scmp.ne.s32.totalorder %s130, %s133
    %p139 = scmp.eq.s32.totalorder %s10, 0
    %p140 = por %p138, %p139
    %p141 = scmp.ne.s32.totalorder %s130, %s133
    %p142 = scmp.eq.s32.totalorder %s15, 1
    %p143 = por %p141, %p142
    %p144 = scmp.ne.s32.totalorder %s133, %s134
    %p145 = scmp.eq.s32.totalorder %s15, 0
    %p146 = por %p144, %p145
    %p147 = scmp.ne.s32.totalorder %s133, %s134
    %p148 = scmp.eq.s32.totalorder %s16, 1
    %p149 = por %p147, %p148
    %p151 = scmp.ne.s32.totalorder %s134, %s150
    %p152 = scmp.eq.s32.totalorder %s16, 0
    %p153 = por %p151, %p152
    %p154 = scmp.le.s32.totalorder 1, %s10
    %p155 = scmp.lt.s32.totalorder %s10, 3
    %p156 = pnand %p154, %p155
    %p157 = pneg %p156
    // Predicated region
    $region9: #{tpu_custom_call.1} parent=5 // pred_check
      _
    $region10: #{tpu_custom_call.1} parent=5 // pred_check_branch
      %159 = sbr.rel (%p156) target = $region12
    $region11: #{tpu_custom_call.1} parent=5 // pred_region
      %s160 = ssub.s32 %s10, 1
      // Predicated region
      $region13: #{tpu_custom_call.1} parent=11 // pred_check
        %p161 = pneg %p71
      $region14: #{tpu_custom_call.1} parent=11 // pred_check_branch
        %163 = sbr.rel (%p161) target = $region16
      $region15: #{tpu_custom_call.1} parent=11 // pred_region
        _
      $region16: #{tpu_custom_call.1} parent=11 // pred_fallthru
        _
      // Predicated region
      $region17: #{tpu_custom_call.1} parent=11 // pred_check
        %p164 = pneg %p92
      $region18: #{tpu_custom_call.1} parent=11 // pred_check_branch
        %166 = sbr.rel (%p164) target = $region20
      $region19: #{tpu_custom_call.1} parent=11 // pred_region
        _
      $region20: #{tpu_custom_call.1} parent=11 // pred_fallthru
        _
    $region12: #{tpu_custom_call.1} parent=5 // pred_fallthru
      _
    %p167 = scmp.lt.s32.totalorder %s10, 2
    // Predicated region
    $region21: #{tpu_custom_call.1} parent=5 // pred_check
      %p168 = pneg %p167
    $region22: #{tpu_custom_call.1} parent=5 // pred_check_branch
      %170 = sbr.rel (%p168) target = $region24
    $region23: #{tpu_custom_call.1} parent=5 // pred_region
      // Predicated region
      $region25: #{tpu_custom_call.1} parent=23 // pred_check
        %p171 = pneg %p44
      $region26: #{tpu_custom_call.1} parent=23 // pred_check_branch
        %173 = sbr.rel (%p171) target = $region28
      $region27: #{tpu_custom_call.1} parent=23 // pred_region
        %s174 = smul.u32 32, %s18
        %p175 = scmp.lt.s32.totalorder %s17, 1
        %s176 = scalar_select %p175, %s17, 1
        %p177 = scmp.lt.s32.totalorder %s174, 31
        %s178 = scalar_select %p177, %s174, 31
        %s179 = smul.addr %s176, 32
        %s180 = sadd.s32 %s178, %s179
        %s181 = smul.addr %s180, 4
        %s182 = scalar_lea.vmem %s0, %s181
        %s183 = smul.u32 32, %s18
      $region28: #{tpu_custom_call.1} parent=23 // pred_fallthru
        _
      // Predicated region
      $region29: #{tpu_custom_call.1} parent=23 // pred_check
        %p184 = pneg %p112
      $region30: #{tpu_custom_call.1} parent=23 // pred_check_branch
        %186 = sbr.rel (%p184) target = $region32
      $region31: #{tpu_custom_call.1} parent=23 // pred_region
        %p187 = scmp.lt.s32.totalorder %s17, 1
        %s188 = scalar_select %p187, %s17, 1
        %s189 = scalar_lea.vmem %s3, %s188
      $region32: #{tpu_custom_call.1} parent=23 // pred_fallthru
        _
    $region24: #{tpu_custom_call.1} parent=5 // pred_fallthru
      _
    %p190 = scmp.le.s32.totalorder 1, %s10
    %p191 = scmp.lt.s32.totalorder %s10, 3
    %p192 = pnand %p190, %p191
    %p193 = pneg %p192
    // Predicated region
    $region33: #{tpu_custom_call.1} parent=5 // pred_check
      _
    $region34: #{tpu_custom_call.1} parent=5 // pred_check_branch
      %195 = sbr.rel (%p192) target = $region36
    $region35: #{tpu_custom_call.1} parent=5 // pred_region
      %s196 = ssub.s32 %s10, 1
      %s197 = smul.u32 32, %s20
      %p198 = scmp.lt.s32.totalorder %s19, 1
      %s199 = scalar_select %p198, %s19, 1
      %p200 = scmp.lt.s32.totalorder %s197, 31
      %s201 = scalar_select %p200, %s197, 31
      %s202 = smul.addr %s199, 32
      %s203 = sadd.s32 %s201, %s202
      %s204 = smul.addr %s203, 4
      %s205 = scalar_lea.vmem %s0, %s204
      %p206 = pneg %p50
      %p207 = pneg %p47
      %p208 = pneg %p71
      %p209 = pneg %p68
      %p210 = pneg %p92
      %p211 = pneg %p89
      %p212 = scmp.lt.s32.totalorder %s19, 1
      %s213 = scalar_select %p212, %s19, 1
      %s214 = scalar_lea.vmem %s3, %s213
      %p215 = pneg %p118
      %p216 = pneg %p115
      %p217 = pneg %p146
      %p218 = pneg %p143
      %s219 = smul.u32 32, %s20
      %p220 = scmp.lt.s32.totalorder %s19, 1
      %s221 = scalar_select %p220, %s19, 1
      %p222 = scmp.lt.s32.totalorder %s219, 31
      %s223 = scalar_select %p222, %s219, 31
      %s224 = smul.addr %s221, 32
      %s225 = sadd.s32 %s223, %s224
      %s226 = smul.addr %s225, 4
      %s227 = scalar_lea.vmem %s4, %s226
      %s228 = smul.u32 32, %s20
      %p229 = scmp.lt.s32.totalorder %s19, 1
      %s230 = scalar_select %p229, %s19, 1
      %p231 = scmp.lt.s32.totalorder %s228, 31
      %s232 = scalar_select %p231, %s228, 31
      %s233 = smul.addr %s230, 32
      %s234 = sadd.s32 %s232, %s233
      %s235 = smul.addr %s234, 4
      %s236 = scalar_lea.vmem %s0, %s235
      %s237 = smul.u32 32, %s20
      %p238 = scmp.lt.s32.totalorder %s19, 1
      %s239 = scalar_select %p238, %s19, 1
      %s240 = scalar_lea.vmem %s3, %s239
      %s241 = smul.u32 32, %s20
      %p242 = scmp.lt.s32.totalorder %s19, 1
      %s243 = scalar_select %p242, %s19, 1
      %p244 = scmp.lt.s32.totalorder %s241, 31
      %s245 = scalar_select %p244, %s241, 31
      %s246 = smul.addr %s243, 32
      %s247 = sadd.s32 %s245, %s246
      %s248 = smul.addr %s247, 4
      %s249 = scalar_lea.vmem %s4, %s248
      %s250 = smul.u32 32, %s20
      %v252 = vld [vmem:[%s236] sm:$0xf]
      %v253 = vld [vmem:[%s236 + $0x4] sm:$0xf]
      %v254 = vld [vmem:[%s236 + $0x8] sm:$0xf]
      %v255 = vld [vmem:[%s236 + $0xc] sm:$0xf]
      %v256 = vld [vmem:[%s236 + $0x10] sm:$0xf]
      %v257 = vld [vmem:[%s236 + $0x14] sm:$0xf]
      %v258 = vld [vmem:[%s236 + $0x18] sm:$0xf]
      %v259 = vld [vmem:[%s236 + $0x1c] sm:$0xf]
      %v260 = vld [vmem:[%s236 + $0x20] sm:$0xf]
      %v261 = vld [vmem:[%s236 + $0x24] sm:$0xf]
      %v262 = vld [vmem:[%s236 + $0x28] sm:$0xf]
      %v263 = vld [vmem:[%s236 + $0x2c] sm:$0xf]
      %v264 = vld [vmem:[%s236 + $0x30] sm:$0xf]
      %v265 = vld [vmem:[%s236 + $0x34] sm:$0xf]
      %v266 = vld [vmem:[%s236 + $0x38] sm:$0xf]
      %v267 = vld [vmem:[%s236 + $0x3c] sm:$0xf]
      %v268 = vld [vmem:[%s236 + $0x40] sm:$0xf]
      %v269 = vld [vmem:[%s236 + $0x44] sm:$0xf]
      %v270 = vld [vmem:[%s236 + $0x48] sm:$0xf]
      %v271 = vld [vmem:[%s236 + $0x4c] sm:$0xf]
      %v272 = vld [vmem:[%s236 + $0x50] sm:$0xf]
      %v273 = vld [vmem:[%s236 + $0x54] sm:$0xf]
      %v274 = vld [vmem:[%s236 + $0x58] sm:$0xf]
      %v275 = vld [vmem:[%s236 + $0x5c] sm:$0xf]
      %v276 = vld [vmem:[%s236 + $0x60] sm:$0xf]
      %v277 = vld [vmem:[%s236 + $0x64] sm:$0xf]
      %v278 = vld [vmem:[%s236 + $0x68] sm:$0xf]
      %v279 = vld [vmem:[%s236 + $0x6c] sm:$0xf]
      %v280 = vld [vmem:[%s236 + $0x70] sm:$0xf]
      %v281 = vld [vmem:[%s236 + $0x74] sm:$0xf]
      %v282 = vld [vmem:[%s236 + $0x78] sm:$0xf]
      %v283 = vld [vmem:[%s236 + $0x7c] sm:$0xf]
      %v284 = vld [vmem:[%s1] sm:$0xf]
      %v285 = vld [vmem:[%s1 + $0x4] sm:$0xf]
      %v286 = vld [vmem:[%s1 + $0x8] sm:$0xf]
      %v319 = vunpack.c.l.b16 %v252
      %v320 = vunpack.c.l.b16 %v253
      %v321 = vunpack.c.l.b16 %v254
      %v322 = vunpack.c.l.b16 %v255
      %v323 = vunpack.c.l.b16 %v256
      %v324 = vunpack.c.l.b16 %v257
      %v325 = vunpack.c.l.b16 %v258
      %v326 = vunpack.c.l.b16 %v259
      %v327 = vunpack.c.l.b16 %v260
      %v328 = vunpack.c.l.b16 %v261
      %v329 = vunpack.c.l.b16 %v262
      %v330 = vunpack.c.l.b16 %v263
      %v331 = vunpack.c.l.b16 %v264
      %v332 = vunpack.c.l.b16 %v265
      %v333 = vunpack.c.l.b16 %v266
      %v334 = vunpack.c.l.b16 %v267
      %v335 = vunpack.c.l.b16 %v268
      %v336 = vunpack.c.l.b16 %v269
      %v337 = vunpack.c.l.b16 %v270
      %v338 = vunpack.c.l.b16 %v271
      %v339 = vunpack.c.l.b16 %v272
      %v340 = vunpack.c.l.b16 %v273
      %v341 = vunpack.c.l.b16 %v274
      %v342 = vunpack.c.l.b16 %v275
      %v343 = vunpack.c.l.b16 %v276
      %v344 = vunpack.c.l.b16 %v277
      %v345 = vunpack.c.l.b16 %v278
      %v346 = vunpack.c.l.b16 %v279
      %v347 = vunpack.c.l.b16 %v280
      %v348 = vunpack.c.l.b16 %v281
      %v349 = vunpack.c.l.b16 %v282
      %v350 = vunpack.c.l.b16 %v283
      %v351 = vpack.c.b16 %v320, %v319
      %v352 = vpack.c.b16 %v322, %v321
      %v353 = vpack.c.b16 %v324, %v323
      %v354 = vpack.c.b16 %v326, %v325
      %v355 = vpack.c.b16 %v328, %v327
      %v356 = vpack.c.b16 %v330, %v329
      %v357 = vpack.c.b16 %v332, %v331
      %v358 = vpack.c.b16 %v334, %v333
      %v359 = vpack.c.b16 %v336, %v335
      %v360 = vpack.c.b16 %v338, %v337
      %v361 = vpack.c.b16 %v340, %v339
      %v362 = vpack.c.b16 %v342, %v341
      %v363 = vpack.c.b16 %v344, %v343
      %v364 = vpack.c.b16 %v346, %v345
      %v365 = vpack.c.b16 %v348, %v347
      %v366 = vpack.c.b16 %v350, %v349
      %v370 = vunpack.c.l.b16 %v284
      %v371 = vunpack.c.l.b16 %v285
      %v372 = vunpack.c.l.b16 %v286
      %v373 = vpack.c.b16 %v371, %v370
      %v374 = vpack.c.b16 %v372, %v372
      %vm376 = vcmask 195584
      %v378 = vsel %vm376, %v351, 0
      %v381 = vsel %vm376, %v352, 0
      %v384 = vsel %vm376, %v353, 0
      %v387 = vsel %vm376, %v354, 0
      %v390 = vsel %vm376, %v355, 0
      %v393 = vsel %vm376, %v356, 0
      %v396 = vsel %vm376, %v357, 0
      %v399 = vsel %vm376, %v358, 0
      %v402 = vsel %vm376, %v359, 0
      %v405 = vsel %vm376, %v360, 0
      %v408 = vsel %vm376, %v361, 0
      %v411 = vsel %vm376, %v362, 0
      %v414 = vsel %vm376, %v363, 0
      %v417 = vsel %vm376, %v364, 0
      %v420 = vsel %vm376, %v365, 0
      %v423 = vsel %vm376, %v366, 0
      %vm425 = vcmask 1043456
      %v427 = vsel %vm425, %v374, 0
      %429 = vmatprep.subr.bf16.mxu0 0
      %430 = vmatpush1.bf16.msra.mxu0 %v373
      %431 = vmatprep.subr.bf16.mxu0 0
      %432 = vmatpush1.bf16.msra.mxu0 %v427
      %433 = vmatprep.subr.bf16.mxu0 0
      %434 = vmatpush1.bf16.msra.mxu0 0
      %435 = vmatprep.subr.bf16.mxu0 0
      %436 = vmatpush1.bf16.msra.mxu0 0
      %437 = vmatprep.subr.bf16.mxu0 0
      %438 = vmatpush1.bf16.msra.mxu0 0
      %439 = vmatprep.subr.bf16.mxu0 0
      %440 = vmatpush1.bf16.msra.mxu0 0
      %441 = vmatprep.subr.bf16.mxu0 0
      %442 = vmatpush1.bf16.msra.mxu0 0
      %443 = vmatprep.subr.bf16.mxu0 0
      %444 = vmatpush1.bf16.msra.mxu0 0
      %445 = vmatprep.subr.bf16.mxu0 0
      %446 = vmatpush1.bf16.msra.mxu0 0
      %447 = vmatprep.subr.bf16.mxu0 0
      %448 = vmatpush1.bf16.msra.mxu0 0
      %449 = vmatprep.subr.bf16.mxu0 0
      %450 = vmatpush1.bf16.msra.mxu0 0
      %451 = vmatprep.subr.bf16.mxu0 0
      %452 = vmatpush1.bf16.msra.mxu0 0
      %453 = vmatprep.subr.bf16.mxu0 0
      %454 = vmatpush1.bf16.msra.mxu0 0
      %455 = vmatprep.subr.bf16.mxu0 0
      %456 = vmatpush1.bf16.msra.mxu0 0
      %457 = vmatprep.subr.bf16.mxu0 0
      %458 = vmatpush1.bf16.msra.mxu0 0
      %459 = vmatprep.subr.bf16.mxu0 0
      %460 = vmatpush1.bf16.msra.mxu0 0
      %461 = vmatprep.mubr.bf16.mxu0 0
      %462 = vmatmul.mubr.bf16.gmra.mrb[0].mxu0 %v378
      %v463 = vpop.f32.mrb[0].mxu0
      %v464 = vadd.f32 0.0, %v463
      %v465 = vpop.f32.mrb[0].mxu0
      %v466 = vpop.f32.mrb[0].mxu0
      %v467 = vadd.f32 0.0, %v466
      %v468 = vpop.f32.mrb[0].mxu0
      %469 = vmatprep.mubr.bf16.mxu0 0
      %470 = vmatmul.mubr.bf16.gmra.mrb[0].mxu0 %v381
      %v471 = vpop.f32.mrb[0].mxu0
      %v472 = vadd.f32 0.0, %v471
      %v473 = vpop.f32.mrb[0].mxu0
      %v474 = vpop.f32.mrb[0].mxu0
      %v475 = vadd.f32 0.0, %v474
      %v476 = vpop.f32.mrb[0].mxu0
      %477 = vmatprep.mubr.bf16.mxu0 0
      %478 = vmatmul.mubr.bf16.gmra.mrb[0].mxu0 %v384
      %v479 = vpop.f32.mrb[0].mxu0
      %v480 = vadd.f32 0.0, %v479
      %v481 = vpop.f32.mrb[0].mxu0
      %v482 = vpop.f32.mrb[0].mxu0
      %v483 = vadd.f32 0.0, %v482
      %v484 = vpop.f32.mrb[0].mxu0
      %485 = vmatprep.mubr.bf16.mxu0 0
      %486 = vmatmul.mubr.bf16.gmra.mrb[0].mxu0 %v387
      %v487 = vpop.f32.mrb[0].mxu0
      %v488 = vadd.f32 0.0, %v487
      %v489 = vpop.f32.mrb[0].mxu0
      %v490 = vpop.f32.mrb[0].mxu0
      %v491 = vadd.f32 0.0, %v490
      %v492 = vpop.f32.mrb[0].mxu0
      %493 = vmatprep.mubr.bf16.mxu0 0
      %494 = vmatmul.mubr.bf16.gmra.mrb[0].mxu0 %v390
      %v495 = vpop.f32.mrb[0].mxu0
      %v496 = vadd.f32 0.0, %v495
      %v497 = vpop.f32.mrb[0].mxu0
      %v498 = vpop.f32.mrb[0].mxu0
      %v499 = vadd.f32 0.0, %v498
      %v500 = vpop.f32.mrb[0].mxu0
      %501 = vmatprep.mubr.bf16.mxu0 0
      %502 = vmatmul.mubr.bf16.gmra.mrb[0].mxu0 %v393
      %v503 = vpop.f32.mrb[0].mxu0
      %v504 = vadd.f32 0.0, %v503
      %v505 = vpop.f32.mrb[0].mxu0
      %v506 = vpop.f32.mrb[0].mxu0
      %v507 = vadd.f32 0.0, %v506
      %v508 = vpop.f32.mrb[0].mxu0
      %509 = vmatprep.mubr.bf16.mxu0 0
      %510 = vmatmul.mubr.bf16.gmra.mrb[0].mxu0 %v396
      %v511 = vpop.f32.mrb[0].mxu0
      %v512 = vadd.f32 0.0, %v511
      %v513 = vpop.f32.mrb[0].mxu0
      %v514 = vpop.f32.mrb[0].mxu0
      %v515 = vadd.f32 0.0, %v514
      %v516 = vpop.f32.mrb[0].mxu0
      %517 = vmatprep.mubr.bf16.mxu0 0
      %518 = vmatmul.mubr.bf16.gmra.mrb[0].mxu0 %v399
      %v519 = vpop.f32.mrb[0].mxu0
      %v520 = vadd.f32 0.0, %v519
      %v521 = vpop.f32.mrb[0].mxu0
      %v522 = vpop.f32.mrb[0].mxu0
      %v523 = vadd.f32 0.0, %v522
      %v524 = vpop.f32.mrb[0].mxu0
      %525 = vmatprep.mubr.bf16.mxu0 0
      %526 = vmatmul.mubr.bf16.gmra.mrb[0].mxu0 %v402
      %v527 = vpop.f32.mrb[0].mxu0
      %v528 = vadd.f32 0.0, %v527
      %v529 = vpop.f32.mrb[0].mxu0
      %v530 = vpop.f32.mrb[0].mxu0
      %v531 = vadd.f32 0.0, %v530
      %v532 = vpop.f32.mrb[0].mxu0
      %533 = vmatprep.mubr.bf16.mxu0 0
      %534 = vmatmul.mubr.bf16.gmra.mrb[0].mxu0 %v405
      %v535 = vpop.f32.mrb[0].mxu0
      %v536 = vadd.f32 0.0, %v535
      %v537 = vpop.f32.mrb[0].mxu0
      %v538 = vpop.f32.mrb[0].mxu0
      %v539 = vadd.f32 0.0, %v538
      %v540 = vpop.f32.mrb[0].mxu0
      %541 = vmatprep.mubr.bf16.mxu0 0
      %542 = vmatmul.mubr.bf16.gmra.mrb[0].mxu0 %v408
      %v543 = vpop.f32.mrb[0].mxu0
      %v544 = vadd.f32 0.0, %v543
      %v545 = vpop.f32.mrb[0].mxu0
      %v546 = vpop.f32.mrb[0].mxu0
      %v547 = vadd.f32 0.0, %v546
      %v548 = vpop.f32.mrb[0].mxu0
      %549 = vmatprep.mubr.bf16.mxu0 0
      %550 = vmatmul.mubr.bf16.gmra.mrb[0].mxu0 %v411
      %v551 = vpop.f32.mrb[0].mxu0
      %v552 = vadd.f32 0.0, %v551
      %v553 = vpop.f32.mrb[0].mxu0
      %v554 = vpop.f32.mrb[0].mxu0
      %v555 = vadd.f32 0.0, %v554
      %v556 = vpop.f32.mrb[0].mxu0
      %557 = vmatprep.mubr.bf16.mxu0 0
      %558 = vmatmul.mubr.bf16.gmra.mrb[0].mxu0 %v414
      %v559 = vpop.f32.mrb[0].mxu0
      %v560 = vadd.f32 0.0, %v559
      %v561 = vpop.f32.mrb[0].mxu0
      %v562 = vpop.f32.mrb[0].mxu0
      %v563 = vadd.f32 0.0, %v562
      %v564 = vpop.f32.mrb[0].mxu0
      %565 = vmatprep.mubr.bf16.mxu0 0
      %566 = vmatmul.mubr.bf16.gmra.mrb[0].mxu0 %v417
      %v567 = vpop.f32.mrb[0].mxu0
      %v568 = vadd.f32 0.0, %v567
      %v569 = vpop.f32.mrb[0].mxu0
      %v570 = vpop.f32.mrb[0].mxu0
      %v571 = vadd.f32 0.0, %v570
      %v572 = vpop.f32.mrb[0].mxu0
      %573 = vmatprep.mubr.bf16.mxu0 0
      %574 = vmatmul.mubr.bf16.gmra.mrb[0].mxu0 %v420
      %v575 = vpop.f32.mrb[0].mxu0
      %v576 = vadd.f32 0.0, %v575
      %v577 = vpop.f32.mrb[0].mxu0
      %v578 = vpop.f32.mrb[0].mxu0
      %v579 = vadd.f32 0.0, %v578
      %v580 = vpop.f32.mrb[0].mxu0
      %581 = vmatprep.mubr.bf16.mxu0 0
      %582 = vmatmul.mubr.bf16.gmra.mrb[0].mxu0 %v423
      %v583 = vpop.f32.mrb[0].mxu0
      %v584 = vadd.f32 0.0, %v583
      %v585 = vpop.f32.mrb[0].mxu0
      %v586 = vpop.f32.mrb[0].mxu0
      %v587 = vadd.f32 0.0, %v586
      %v588 = vpop.f32.mrb[0].mxu0
      %589 = vdwg.mxu0
      %v590 = vld [vmem:[%s2] sm:$0x1]
      %v592 = vlaneseq
      %v593 = vshrl.u32 %v592, 7
      %v594 = vsub.s32 0, %v593
      %v595 = vrot.slane %v590, %v594
      %v597 = vmul.f32 %v464, %v595
      %v598 = vmul.f32 %v467, %v595
      %v599 = vmul.f32 %v472, %v595
      %v600 = vmul.f32 %v475, %v595
      %v601 = vmul.f32 %v480, %v595
      %v602 = vmul.f32 %v483, %v595
      %v603 = vmul.f32 %v488, %v595
      %v604 = vmul.f32 %v491, %v595
      %v605 = vmul.f32 %v496, %v595
      %v606 = vmul.f32 %v499, %v595
      %v607 = vmul.f32 %v504, %v595
      %v608 = vmul.f32 %v507, %v595
      %v609 = vmul.f32 %v512, %v595
      %v610 = vmul.f32 %v515, %v595
      %v611 = vmul.f32 %v520, %v595
      %v612 = vmul.f32 %v523, %v595
      %v613 = vmul.f32 %v528, %v595
      %v614 = vmul.f32 %v531, %v595
      %v615 = vmul.f32 %v536, %v595
      %v616 = vmul.f32 %v539, %v595
      %v617 = vmul.f32 %v544, %v595
      %v618 = vmul.f32 %v547, %v595
      %v619 = vmul.f32 %v552, %v595
      %v620 = vmul.f32 %v555, %v595
      %v621 = vmul.f32 %v560, %v595
      %v622 = vmul.f32 %v563, %v595
      %v623 = vmul.f32 %v568, %v595
      %v624 = vmul.f32 %v571, %v595
      %v625 = vmul.f32 %v576, %v595
      %v626 = vmul.f32 %v579, %v595
      %v627 = vmul.f32 %v584, %v595
      %v628 = vmul.f32 %v587, %v595
      %v629 = vld [vmem:[%s240] sm:$0x1]
      %v631 = vlaneseq
      %v632 = vshrl.u32 %v631, 7
      %v633 = vsub.s32 0, %v632
      %v634 = vrot.slane %v629, %v633
      %v636 = vadd.f32 %v597, %v634
      %v637 = vadd.f32 %v598, %v634
      %v638 = vadd.f32 %v599, %v634
      %v639 = vadd.f32 %v600, %v634
      %v640 = vadd.f32 %v601, %v634
      %v641 = vadd.f32 %v602, %v634
      %v642 = vadd.f32 %v603, %v634
      %v643 = vadd.f32 %v604, %v634
      %v644 = vadd.f32 %v605, %v634
      %v645 = vadd.f32 %v606, %v634
      %v646 = vadd.f32 %v607, %v634
      %v647 = vadd.f32 %v608, %v634
      %v648 = vadd.f32 %v609, %v634
      %v649 = vadd.f32 %v610, %v634
      %v650 = vadd.f32 %v611, %v634
      %v651 = vadd.f32 %v612, %v634
      %v652 = vadd.f32 %v613, %v634
      %v653 = vadd.f32 %v614, %v634
      %v654 = vadd.f32 %v615, %v634
      %v655 = vadd.f32 %v616, %v634
      %v656 = vadd.f32 %v617, %v634
      %v657 = vadd.f32 %v618, %v634
      %v658 = vadd.f32 %v619, %v634
      %v659 = vadd.f32 %v620, %v634
      %v660 = vadd.f32 %v621, %v634
      %v661 = vadd.f32 %v622, %v634
      %v662 = vadd.f32 %v623, %v634
      %v663 = vadd.f32 %v624, %v634
      %v664 = vadd.f32 %v625, %v634
      %v665 = vadd.f32 %v626, %v634
      %v666 = vadd.f32 %v627, %v634
      %v667 = vadd.f32 %v628, %v634
      %v668 = vmax.f32 %v636, 0.0
      %v669 = vmax.f32 %v637, 0.0
      %v670 = vmax.f32 %v638, 0.0
      %v671 = vmax.f32 %v639, 0.0
      %v672 = vmax.f32 %v640, 0.0
      %v673 = vmax.f32 %v641, 0.0
      %v674 = vmax.f32 %v642, 0.0
      %v675 = vmax.f32 %v643, 0.0
      %v676 = vmax.f32 %v644, 0.0
      %v677 = vmax.f32 %v645, 0.0
      %v678 = vmax.f32 %v646, 0.0
      %v679 = vmax.f32 %v647, 0.0
      %v680 = vmax.f32 %v648, 0.0
      %v681 = vmax.f32 %v649, 0.0
      %v682 = vmax.f32 %v650, 0.0
      %v683 = vmax.f32 %v651, 0.0
      %v684 = vmax.f32 %v652, 0.0
      %v685 = vmax.f32 %v653, 0.0
      %v686 = vmax.f32 %v654, 0.0
      %v687 = vmax.f32 %v655, 0.0
      %v688 = vmax.f32 %v656, 0.0
      %v689 = vmax.f32 %v657, 0.0
      %v690 = vmax.f32 %v658, 0.0
      %v691 = vmax.f32 %v659, 0.0
      %v692 = vmax.f32 %v660, 0.0
      %v693 = vmax.f32 %v661, 0.0
      %v694 = vmax.f32 %v662, 0.0
      %v695 = vmax.f32 %v663, 0.0
      %v696 = vmax.f32 %v664, 0.0
      %v697 = vmax.f32 %v665, 0.0
      %v698 = vmax.f32 %v666, 0.0
      %v699 = vmax.f32 %v667, 0.0
      %v700 = vpack.c.bf16 %v669, %v668
      %v701 = vpack.c.bf16 %v671, %v670
      %v702 = vpack.c.bf16 %v673, %v672
      %v703 = vpack.c.bf16 %v675, %v674
      %v704 = vpack.c.bf16 %v677, %v676
      %v705 = vpack.c.bf16 %v679, %v678
      %v706 = vpack.c.bf16 %v681, %v680
      %v707 = vpack.c.bf16 %v683, %v682
      %v708 = vpack.c.bf16 %v685, %v684
      %v709 = vpack.c.bf16 %v687, %v686
      %v710 = vpack.c.bf16 %v689, %v688
      %v711 = vpack.c.bf16 %v691, %v690
      %v712 = vpack.c.bf16 %v693, %v692
      %v713 = vpack.c.bf16 %v695, %v694
      %v714 = vpack.c.bf16 %v697, %v696
      %v715 = vpack.c.bf16 %v699, %v698
      %v732 = vunpack.c.l.b16 %v700
      %v733 = vunpack.c.h.b16 %v700
      %v734 = vunpack.c.l.b16 %v701
      %v735 = vunpack.c.h.b16 %v701
      %v736 = vunpack.c.l.b16 %v702
      %v737 = vunpack.c.h.b16 %v702
      %v738 = vunpack.c.l.b16 %v703
      %v739 = vunpack.c.h.b16 %v703
      %v740 = vunpack.c.l.b16 %v704
      %v741 = vunpack.c.h.b16 %v704
      %v742 = vunpack.c.l.b16 %v705
      %v743 = vunpack.c.h.b16 %v705
      %v744 = vunpack.c.l.b16 %v706
      %v745 = vunpack.c.h.b16 %v706
      %v746 = vunpack.c.l.b16 %v707
      %v747 = vunpack.c.h.b16 %v707
      %v748 = vunpack.c.l.b16 %v708
      %v749 = vunpack.c.h.b16 %v708
      %v750 = vunpack.c.l.b16 %v709
      %v751 = vunpack.c.h.b16 %v709
      %v752 = vunpack.c.l.b16 %v710
      %v753 = vunpack.c.h.b16 %v710
      %v754 = vunpack.c.l.b16 %v711
      %v755 = vunpack.c.h.b16 %v711
      %v756 = vunpack.c.l.b16 %v712
      %v757 = vunpack.c.h.b16 %v712
      %v758 = vunpack.c.l.b16 %v713
      %v759 = vunpack.c.h.b16 %v713
      %v760 = vunpack.c.l.b16 %v714
      %v761 = vunpack.c.h.b16 %v714
      %v762 = vunpack.c.l.b16 %v715
      %v763 = vunpack.c.h.b16 %v715
      %v764 = vpack.c.b16 %v732, %v732
      %v765 = vpack.c.b16 %v733, %v733
      %v766 = vpack.c.b16 %v734, %v734
      %v767 = vpack.c.b16 %v735, %v735
      %v768 = vpack.c.b16 %v736, %v736
      %v769 = vpack.c.b16 %v737, %v737
      %v770 = vpack.c.b16 %v738, %v738
      %v771 = vpack.c.b16 %v739, %v739
      %v772 = vpack.c.b16 %v740, %v740
      %v773 = vpack.c.b16 %v741, %v741
      %v774 = vpack.c.b16 %v742, %v742
      %v775 = vpack.c.b16 %v743, %v743
      %v776 = vpack.c.b16 %v744, %v744
      %v777 = vpack.c.b16 %v745, %v745
      %v778 = vpack.c.b16 %v746, %v746
      %v779 = vpack.c.b16 %v747, %v747
      %v780 = vpack.c.b16 %v748, %v748
      %v781 = vpack.c.b16 %v749, %v749
      %v782 = vpack.c.b16 %v750, %v750
      %v783 = vpack.c.b16 %v751, %v751
      %v784 = vpack.c.b16 %v752, %v752
      %v785 = vpack.c.b16 %v753, %v753
      %v786 = vpack.c.b16 %v754, %v754
      %v787 = vpack.c.b16 %v755, %v755
      %v788 = vpack.c.b16 %v756, %v756
      %v789 = vpack.c.b16 %v757, %v757
      %v790 = vpack.c.b16 %v758, %v758
      %v791 = vpack.c.b16 %v759, %v759
      %v792 = vpack.c.b16 %v760, %v760
      %v793 = vpack.c.b16 %v761, %v761
      %v794 = vpack.c.b16 %v762, %v762
      %v795 = vpack.c.b16 %v763, %v763
      %vm828 = vcmask 388096
      %829 = vst.msk [vmem:[%s249] sm:$0xf] %vm828, %v764
      %830 = vst.msk [vmem:[%s249 + $0x4] sm:$0xf] %vm828, %v765
      %831 = vst.msk [vmem:[%s249 + $0x8] sm:$0xf] %vm828, %v766
      %832 = vst.msk [vmem:[%s249 + $0xc] sm:$0xf] %vm828, %v767
      %833 = vst.msk [vmem:[%s249 + $0x10] sm:$0xf] %vm828, %v768
      %834 = vst.msk [vmem:[%s249 + $0x14] sm:$0xf] %vm828, %v769
      %835 = vst.msk [vmem:[%s249 + $0x18] sm:$0xf] %vm828, %v770
      %836 = vst.msk [vmem:[%s249 + $0x1c] sm:$0xf] %vm828, %v771
      %837 = vst.msk [vmem:[%s249 + $0x20] sm:$0xf] %vm828, %v772
      %838 = vst.msk [vmem:[%s249 + $0x24] sm:$0xf] %vm828, %v773
      %839 = vst.msk [vmem:[%s249 + $0x28] sm:$0xf] %vm828, %v774
      %840 = vst.msk [vmem:[%s249 + $0x2c] sm:$0xf] %vm828, %v775
      %841 = vst.msk [vmem:[%s249 + $0x30] sm:$0xf] %vm828, %v776
      %842 = vst.msk [vmem:[%s249 + $0x34] sm:$0xf] %vm828, %v777
      %843 = vst.msk [vmem:[%s249 + $0x38] sm:$0xf] %vm828, %v778
      %844 = vst.msk [vmem:[%s249 + $0x3c] sm:$0xf] %vm828, %v779
      %845 = vst.msk [vmem:[%s249 + $0x40] sm:$0xf] %vm828, %v780
      %846 = vst.msk [vmem:[%s249 + $0x44] sm:$0xf] %vm828, %v781
      %847 = vst.msk [vmem:[%s249 + $0x48] sm:$0xf] %vm828, %v782
      %848 = vst.msk [vmem:[%s249 + $0x4c] sm:$0xf] %vm828, %v783
      %849 = vst.msk [vmem:[%s249 + $0x50] sm:$0xf] %vm828, %v784
      %850 = vst.msk [vmem:[%s249 + $0x54] sm:$0xf] %vm828, %v785
      %851 = vst.msk [vmem:[%s249 + $0x58] sm:$0xf] %vm828, %v786
      %852 = vst.msk [vmem:[%s249 + $0x5c] sm:$0xf] %vm828, %v787
      %853 = vst.msk [vmem:[%s249 + $0x60] sm:$0xf] %vm828, %v788
      %854 = vst.msk [vmem:[%s249 + $0x64] sm:$0xf] %vm828, %v789
      %855 = vst.msk [vmem:[%s249 + $0x68] sm:$0xf] %vm828, %v790
      %856 = vst.msk [vmem:[%s249 + $0x6c] sm:$0xf] %vm828, %v791
      %857 = vst.msk [vmem:[%s249 + $0x70] sm:$0xf] %vm828, %v792
      %858 = vst.msk [vmem:[%s249 + $0x74] sm:$0xf] %vm828, %v793
      %859 = vst.msk [vmem:[%s249 + $0x78] sm:$0xf] %vm828, %v794
      %860 = vst.msk [vmem:[%s249 + $0x7c] sm:$0xf] %vm828, %v795
      %s861 = smul.u32 32, %s20
      %p862 = scmp.lt.s32.totalorder %s19, 1
      %s863 = scalar_select %p862, %s19, 1
      %p864 = scmp.lt.s32.totalorder %s861, 31
      %s865 = scalar_select %p864, %s861, 31
      %s866 = smul.addr %s863, 32
      %s867 = sadd.s32 %s865, %s866
      %s868 = smul.addr %s867, 4
      %s869 = scalar_lea.vmem %s4, %s868
      // Predicated region
      $region37: #{tpu_custom_call.1} parent=35 // pred_check
        %p870 = pneg %p143
      $region38: #{tpu_custom_call.1} parent=35 // pred_check_branch
        %872 = sbr.rel (%p870) target = $region40
      $region39: #{tpu_custom_call.1} parent=35 // pred_region
        %s873 = smul.u32 32, %s20
      $region40: #{tpu_custom_call.1} parent=35 // pred_fallthru
        _
    $region36: #{tpu_custom_call.1} parent=5 // pred_fallthru
      _
    %p874 = scmp.le.s32.totalorder 2, %s10
    // Predicated region
    $region41: #{tpu_custom_call.1} parent=5 // pred_check
      %p875 = pneg %p874
    $region42: #{tpu_custom_call.1} parent=5 // pred_check_branch
      %877 = sbr.rel (%p875) target = $region44
    $region43: #{tpu_custom_call.1} parent=5 // pred_region
      %s878 = ssub.s32 %s10, 2
      // Predicated region
      $region45: #{tpu_custom_call.1} parent=43 // pred_check
        %p879 = pneg %p149
      $region46: #{tpu_custom_call.1} parent=43 // pred_check_branch
        %881 = sbr.rel (%p879) target = $region48
      $region47: #{tpu_custom_call.1} parent=43 // pred_region
        %s882 = smul.u32 32, %s22
        %p883 = scmp.lt.s32.totalorder %s21, 1
        %s884 = scalar_select %p883, %s21, 1
        %p885 = scmp.lt.s32.totalorder %s882, 31
        %s886 = scalar_select %p885, %s882, 31
        %s887 = smul.addr %s884, 32
        %s888 = sadd.s32 %s886, %s887
        %s889 = smul.addr %s888, 4
        %s890 = scalar_lea.vmem %s4, %s889
      $region48: #{tpu_custom_call.1} parent=43 // pred_fallthru
        _
    $region44: #{tpu_custom_call.1} parent=5 // pred_fallthru
      _
  $region6: #{tpu_custom_call.1} parent=0 // loop_footer
    %s14 = sadd.s32 1, %s10
  $region7: #{tpu_custom_call.1} parent=0 // loop_footer_branch
    %9 = sbr.rel target = $region3
  $region8: #{tpu_custom_call.1} parent=0 // loop_exit
    _

</llo_original>
